<compile_context>
chip_gen: v6e
topology: v6e:2x2x1
jax: 0.10.0
libtpu: 0.0.40
codegen_flags: <defaults>
</compile_context>

<pallas_src>
from functools import partial

import jax
import jax.numpy as jnp
from jax import lax
from jax.experimental import pallas as pl
from jax.experimental.pallas import tpu as pltpu

NEG_SLOPE = 0.01   # PyTorch nn.LeakyReLU default
CHUNK = 512        # lanes processed per in-kernel chunk (multiple of 128)
SUBLANES = 8       # f32 sublane tiling


def _leaky_relu(x):
    # 2-op form (max + mul); identical values to where(x>=0, x, 0.01*x).
    return jnp.maximum(x, NEG_SLOPE * x)


def _sigmoid(x):
    return 1.0 / (1.0 + jnp.exp(-x))


def _round_up(n, m):
    return ((n + m - 1) // m) * m


# --------------------------------------------------------------------------
# Kernel
# --------------------------------------------------------------------------
def numnet_kernel(x_ref, pack_ref, out_ref):
    # x_ref:    (5, K, CHUNK) f32 -- feature-major batch, K lane-chunks.
    # pack_ref: (18, 128)     f32 -- packed weights/biases (see _pack_params).
    # out_ref:  (K, CHUNK)    i32 -- predicted class per batch element.

    # Weights loaded once per grid step, kept vreg-resident across the loop.
    w1 = pack_ref[0:10, 0:5]       # (10, 5)
    b1 = pack_ref[0:10, 5:6]       # (10, 1)
    w2 = pack_ref[10:15, 0:10]     # (5, 10)
    b2 = pack_ref[10:15, 10:11]    # (5, 1)
    w3 = pack_ref[15:18, 0:5]      # (3, 5)
    b3 = pack_ref[15:18, 5:6]      # (3, 1)

    n_chunks = out_ref.shape[0]

    def chunk_body(c, carry):
        # ---- layer 1: (10, C) = W1 @ x_chunk + b1 as VPU outer-product FMAs.
        h1 = b1 + w1[:, 0:1] * x_ref[0, pl.ds(c, 1), :]
        for k in range(1, 5):
            h1 = h1 + w1[:, k:k + 1] * x_ref[k, pl.ds(c, 1), :]
        h1 = _leaky_relu(h1)                       # (10, C)

        # ---- layer 2: (5, C)
        h2 = b2 + w2[:, 0:1] * h1[0:1, :]
        for k in range(1, 10):
            h2 = h2 + w2[:, k:k + 1] * h1[k:k + 1, :]
        h2 = _leaky_relu(h2)                       # (5, C)

        # ---- layer 3 + sigmoid: (3, C). exp lands on the EUP slot; applying
        # sigmoid keeps saturation-tie argmax behaviour identical to PyTorch.
        logits = b3 + w3[:, 0:1] * h2[0:1, :]
        for k in range(1, 5):
            logits = logits + w3[:, k:k + 1] * h2[k:k + 1, :]
        probs = _sigmoid(logits)                   # (3, C)

        # ---- 3-class argmax, first occurrence wins (matches torch.argmax).
        p0 = probs[0:1, :]
        p1 = probs[1:2, :]
        p2 = probs[2:3, :]
        idx = jnp.zeros(p0.shape, jnp.int32)
        best = p0
        take1 = p1 > best
        idx = jnp.where(take1, 1, idx)
        best = jnp.where(take1, p1, best)
        take2 = p2 > best
        idx = jnp.where(take2, 2, idx)

        out_ref[pl.ds(c, 1), :] = idx
        return carry

    lax.fori_loop(0, n_chunks, chunk_body, 0)


# --------------------------------------------------------------------------
# Wrappers
# --------------------------------------------------------------------------
def _pack_params(params):
    """Pack the six (tiny) weight/bias arrays into one (18, 128) f32 block."""
    w1, b1, w2, b2, w3, b3 = params
    pack = jnp.zeros((18, 128), jnp.float32)
    pack = pack.at[0:10, 0:5].set(w1)
    pack = pack.at[0:10, 5:6].set(b1.reshape(10, 1))
    pack = pack.at[10:15, 0:10].set(w2)
    pack = pack.at[10:15, 10:11].set(b2.reshape(5, 1))
    pack = pack.at[15:18, 0:5].set(w3)
    pack = pack.at[15:18, 5:6].set(b3.reshape(3, 1))
    return pack


def _numnet_forward_impl(x_fm, params, tile_b):
    """x_fm: (5, B) feature-major float32. Returns (B,) int32 predictions."""
    assert x_fm.ndim == 2 and x_fm.shape[0] == 5, x_fm.shape
    B = x_fm.shape[1]
    x_fm = x_fm.astype(jnp.float32)
    pack = _pack_params(params)

    # Tile selection: chunks are 512 lanes. Multi-tile grids keep the chunk
    # count per tile a multiple of 8 so the 3-D blocks satisfy the (8,128)
    # rule; a single-tile grid uses the full (padded) chunk dim.
    b_min = _round_up(max(B, 1), CHUNK)
    tile_req = max(CHUNK * SUBLANES, _round_up(tile_b, CHUNK * SUBLANES))
    if b_min <= tile_req:
        tile = b_min                  # grid == 1, block dims == full dims
    else:
        tile = tile_req               # grid >= 2 (feeds both v7x TensorCores)
    b_pad = _round_up(B, tile)
    if b_pad != B:
        x_fm = jnp.pad(x_fm, ((0, 0), (0, b_pad - B)))
    nb = b_pad // CHUNK
    k_per_tile = tile // CHUNK
    grid = b_pad // tile

    x3 = x_fm.reshape(5, nb, CHUNK)   # free reshape (split of the last dim)

    out = pl.pallas_call(
        numnet_kernel,
        out_shape=jax.ShapeDtypeStruct((nb, CHUNK), jnp.int32),
        grid=(grid,),
        in_specs=[
            pl.BlockSpec((5, k_per_tile, CHUNK), lambda i: (0, i, 0)),  # x tile
            pl.BlockSpec((18, 128), lambda i: (0, 0)),                  # weights
        ],
        out_specs=pl.BlockSpec((k_per_tile, CHUNK), lambda i: (i, 0)),
        compiler_params=pltpu.CompilerParams(
            dimension_semantics=("parallel",),
        ),
    )(x3, pack)

    return out.reshape(b_pad)[:B]


@partial(jax.jit, static_argnames=("tile_b",))
def numnet_forward_fm(x_fm, params, tile_b=32768):
    """Fast path: feature-major (5, B) input, no relayout pass."""
    return _numnet_forward_impl(x_fm, params, tile_b)


@partial(jax.jit, static_argnames=("tile_b",))
def numnet_forward(x, params, tile_b=32768):
    """PyTorch-layout (B, 5) input; pays one in-jit relayout copy."""
    return _numnet_forward_impl(x.T, params, tile_b)


# --------------------------------------------------------------------------
# Reference + init (PyTorch semantics)
# --------------------------------------------------------------------------
def init_params(key):
    """xavier_uniform_ weights in PyTorch (out, in) layout, zero biases."""
    def xavier(k, fan_out, fan_in):
        bound = (6.0 / (fan_in + fan_out)) ** 0.5
        return jax.random.uniform(k, (fan_out, fan_in), jnp.float32, -bound, bound)

    k1, k2, k3 = jax.random.split(key, 3)
    return (xavier(k1, 10, 5), jnp.zeros((10,), jnp.float32),
            xavier(k2, 5, 10), jnp.zeros((5,), jnp.float32),
            xavier(k3, 3, 5), jnp.zeros((3,), jnp.float32))


def reference_probs(x, params):
    w1, b1, w2, b2, w3, b3 = params
    h1 = _leaky_relu(x @ w1.T + b1)
    h2 = _leaky_relu(h1 @ w2.T + b2)
    return _sigmoid(h2 @ w3.T + b3)


def reference_forward(x, params):
    return jnp.argmax(reference_probs(x, params), axis=1).astype(jnp.int32)


def _check_predictions(y_kernel, x, params, tol=1e-6):
    """Exact match, except where the reference's top-2 probabilities are within
    tol (accumulation-order / sigmoid-saturation near-ties)."""
    y_ref = reference_forward(x, params)
    probs = reference_probs(x, params)
    top2 = jnp.sort(probs, axis=1)[:, -2:]
    near_tie = (top2[:, 1] - top2[:, 0]) <= tol
    ok = (y_kernel == y_ref) | near_tie
    if not bool(jnp.all(ok)):
        bad = jnp.nonzero(~ok)[0]
        raise AssertionError(f"prediction mismatch at rows {bad}")


# --------------------------------------------------------------------------
# Self-test
# --------------------------------------------------------------------------
if __name__ == "__main__":
    key = jax.random.PRNGKey(0)
    k_param, k_small, k_big = jax.random.split(key, 3)
    params = init_params(k_param)

    # Small batch via the sample-major (B, 5) convenience path
    # (single grid step, single 512-lane chunk, padded tail discarded).
    x_small = jax.random.normal(k_small, (8, 5), jnp.float32)
    y_small = jax.block_until_ready(numnet_forward(x_small, params))
    assert y_small.shape == (8,) and y_small.dtype == jnp.int32
    _check_predictions(y_small, x_small, params)

    # Larger batch via the transpose-free feature-major fast path:
    # tile_b=4096 -> grid=(2,), 8 chunks per tile, multi-tile + padded tail.
    x_big = jax.random.normal(k_big, (5000, 5), jnp.float32)
    y_big = jax.block_until_ready(
        numnet_forward_fm(x_big.T, params, tile_b=4096))
    assert y_big.shape == (5000,)
    _check_predictions(y_big, x_big, params)

    print("KERNEL_OK")
</pallas_src>

<mosaic_0001>
module attributes {stable_mosaic.version = 11 : i64} {
  func.func @numnet_kernel(%arg0: i32, %arg1: memref<5x1x512xf32, #tpu.memory_space<vmem>>, %arg2: memref<18x128xf32, #tpu.memory_space<vmem>>, %arg3: memref<1x512xi32, #tpu.memory_space<vmem>>) attributes {dimension_semantics = [#tpu.dimension_semantics<parallel>], iteration_bounds = array<i64: 1>, scalar_prefetch = 0 : i64, scratch_operands = 0 : i64, tpu.core_type = #tpu.core_type<tc>, window_params = [{transform_indices = @transform_0, window_bounds = array<i64: 5, 1, 512>}, {pipeline_mode = #tpu.pipeline_mode<synchronous>, transform_indices = @transform_1, window_bounds = array<i64: 18, 128>}, {transform_indices = @transform_2, window_bounds = array<i64: 1, 512>}]} {
    %c0 = arith.constant 0 : index
    %c0_0 = arith.constant 0 : index
    %0 = vector.load %arg2[%c0, %c0_0] : memref<18x128xf32, #tpu.memory_space<vmem>>, vector<10x5xf32>
    %c0_1 = arith.constant 0 : index
    %c5 = arith.constant 5 : index
    %1 = vector.load %arg2[%c0_1, %c5] : memref<18x128xf32, #tpu.memory_space<vmem>>, vector<10x1xf32>
    %c10 = arith.constant 10 : index
    %c0_2 = arith.constant 0 : index
    %2 = vector.load %arg2[%c10, %c0_2] : memref<18x128xf32, #tpu.memory_space<vmem>>, vector<5x10xf32>
    %c10_3 = arith.constant 10 : index
    %c10_4 = arith.constant 10 : index
    %3 = vector.load %arg2[%c10_3, %c10_4] : memref<18x128xf32, #tpu.memory_space<vmem>>, vector<5x1xf32>
    %c15 = arith.constant 15 : index
    %c0_5 = arith.constant 0 : index
    %4 = vector.load %arg2[%c15, %c0_5] : memref<18x128xf32, #tpu.memory_space<vmem>>, vector<3x5xf32>
    %c15_6 = arith.constant 15 : index
    %c5_7 = arith.constant 5 : index
    %5 = vector.load %arg2[%c15_6, %c5_7] : memref<18x128xf32, #tpu.memory_space<vmem>>, vector<3x1xf32>
    %c0_i32 = arith.constant 0 : i32
    %6 = vector.extract_strided_slice %0 {offsets = [0, 0], sizes = [10, 1], strides = [1, 1]} : vector<10x5xf32> to vector<10x1xf32>
    %c0_8 = arith.constant 0 : index
    %7 = arith.index_cast %c0_i32 : i32 to index
    %c0_9 = arith.constant 0 : index
    %8 = vector.load %arg1[%c0_8, %7, %c0_9] : memref<5x1x512xf32, #tpu.memory_space<vmem>>, vector<1x1x512xf32>
    %9 = vector.shape_cast %8 : vector<1x1x512xf32> to vector<1x512xf32>
    %10 = vector.broadcast %6 : vector<10x1xf32> to vector<10x512xf32>
    %11 = vector.broadcast %9 : vector<1x512xf32> to vector<10x512xf32>
    %12 = arith.mulf %10, %11 : vector<10x512xf32>
    %13 = vector.broadcast %1 : vector<10x1xf32> to vector<10x512xf32>
    %14 = arith.addf %13, %12 : vector<10x512xf32>
    %15 = vector.extract_strided_slice %0 {offsets = [0, 1], sizes = [10, 1], strides = [1, 1]} : vector<10x5xf32> to vector<10x1xf32>
    %c1 = arith.constant 1 : index
    %16 = arith.index_cast %c0_i32 : i32 to index
    %c0_10 = arith.constant 0 : index
    %17 = vector.load %arg1[%c1, %16, %c0_10] : memref<5x1x512xf32, #tpu.memory_space<vmem>>, vector<1x1x512xf32>
    %18 = vector.shape_cast %17 : vector<1x1x512xf32> to vector<1x512xf32>
    %19 = vector.broadcast %15 : vector<10x1xf32> to vector<10x512xf32>
    %20 = vector.broadcast %18 : vector<1x512xf32> to vector<10x512xf32>
    %21 = arith.mulf %19, %20 : vector<10x512xf32>
    %22 = arith.addf %14, %21 : vector<10x512xf32>
    %23 = vector.extract_strided_slice %0 {offsets = [0, 2], sizes = [10, 1], strides = [1, 1]} : vector<10x5xf32> to vector<10x1xf32>
    %c2 = arith.constant 2 : index
    %24 = arith.index_cast %c0_i32 : i32 to index
    %c0_11 = arith.constant 0 : index
    %25 = vector.load %arg1[%c2, %24, %c0_11] : memref<5x1x512xf32, #tpu.memory_space<vmem>>, vector<1x1x512xf32>
    %26 = vector.shape_cast %25 : vector<1x1x512xf32> to vector<1x512xf32>
    %27 = vector.broadcast %23 : vector<10x1xf32> to vector<10x512xf32>
    %28 = vector.broadcast %26 : vector<1x512xf32> to vector<10x512xf32>
    %29 = arith.mulf %27, %28 : vector<10x512xf32>
    %30 = arith.addf %22, %29 : vector<10x512xf32>
    %31 = vector.extract_strided_slice %0 {offsets = [0, 3], sizes = [10, 1], strides = [1, 1]} : vector<10x5xf32> to vector<10x1xf32>
    %c3 = arith.constant 3 : index
    %32 = arith.index_cast %c0_i32 : i32 to index
    %c0_12 = arith.constant 0 : index
    %33 = vector.load %arg1[%c3, %32, %c0_12] : memref<5x1x512xf32, #tpu.memory_space<vmem>>, vector<1x1x512xf32>
    %34 = vector.shape_cast %33 : vector<1x1x512xf32> to vector<1x512xf32>
    %35 = vector.broadcast %31 : vector<10x1xf32> to vector<10x512xf32>
    %36 = vector.broadcast %34 : vector<1x512xf32> to vector<10x512xf32>
    %37 = arith.mulf %35, %36 : vector<10x512xf32>
    %38 = arith.addf %30, %37 : vector<10x512xf32>
    %39 = vector.extract_strided_slice %0 {offsets = [0, 4], sizes = [10, 1], strides = [1, 1]} : vector<10x5xf32> to vector<10x1xf32>
    %c4 = arith.constant 4 : index
    %40 = arith.index_cast %c0_i32 : i32 to index
    %c0_13 = arith.constant 0 : index
    %41 = vector.load %arg1[%c4, %40, %c0_13] : memref<5x1x512xf32, #tpu.memory_space<vmem>>, vector<1x1x512xf32>
    %42 = vector.shape_cast %41 : vector<1x1x512xf32> to vector<1x512xf32>
    %43 = vector.broadcast %39 : vector<10x1xf32> to vector<10x512xf32>
    %44 = vector.broadcast %42 : vector<1x512xf32> to vector<10x512xf32>
    %45 = arith.mulf %43, %44 : vector<10x512xf32>
    %46 = arith.addf %38, %45 : vector<10x512xf32>
    %cst = arith.constant 0.00999999977 : f32
    %47 = vector.broadcast %cst : f32 to vector<10x512xf32>
    %48 = arith.mulf %47, %46 : vector<10x512xf32>
    %49 = arith.maximumf %46, %48 : vector<10x512xf32>
    %50 = vector.extract_strided_slice %2 {offsets = [0, 0], sizes = [5, 1], strides = [1, 1]} : vector<5x10xf32> to vector<5x1xf32>
    %51 = vector.extract_strided_slice %49 {offsets = [0, 0], sizes = [1, 512], strides = [1, 1]} : vector<10x512xf32> to vector<1x512xf32>
    %52 = vector.broadcast %50 : vector<5x1xf32> to vector<5x512xf32>
    %53 = vector.broadcast %51 : vector<1x512xf32> to vector<5x512xf32>
    %54 = arith.mulf %52, %53 : vector<5x512xf32>
    %55 = vector.broadcast %3 : vector<5x1xf32> to vector<5x512xf32>
    %56 = arith.addf %55, %54 : vector<5x512xf32>
    %57 = vector.extract_strided_slice %2 {offsets = [0, 1], sizes = [5, 1], strides = [1, 1]} : vector<5x10xf32> to vector<5x1xf32>
    %58 = vector.extract_strided_slice %49 {offsets = [1, 0], sizes = [1, 512], strides = [1, 1]} : vector<10x512xf32> to vector<1x512xf32>
    %59 = vector.broadcast %57 : vector<5x1xf32> to vector<5x512xf32>
    %60 = vector.broadcast %58 : vector<1x512xf32> to vector<5x512xf32>
    %61 = arith.mulf %59, %60 : vector<5x512xf32>
    %62 = arith.addf %56, %61 : vector<5x512xf32>
    %63 = vector.extract_strided_slice %2 {offsets = [0, 2], sizes = [5, 1], strides = [1, 1]} : vector<5x10xf32> to vector<5x1xf32>
    %64 = vector.extract_strided_slice %49 {offsets = [2, 0], sizes = [1, 512], strides = [1, 1]} : vector<10x512xf32> to vector<1x512xf32>
    %65 = vector.broadcast %63 : vector<5x1xf32> to vector<5x512xf32>
    %66 = vector.broadcast %64 : vector<1x512xf32> to vector<5x512xf32>
    %67 = arith.mulf %65, %66 : vector<5x512xf32>
    %68 = arith.addf %62, %67 : vector<5x512xf32>
    %69 = vector.extract_strided_slice %2 {offsets = [0, 3], sizes = [5, 1], strides = [1, 1]} : vector<5x10xf32> to vector<5x1xf32>
    %70 = vector.extract_strided_slice %49 {offsets = [3, 0], sizes = [1, 512], strides = [1, 1]} : vector<10x512xf32> to vector<1x512xf32>
    %71 = vector.broadcast %69 : vector<5x1xf32> to vector<5x512xf32>
    %72 = vector.broadcast %70 : vector<1x512xf32> to vector<5x512xf32>
    %73 = arith.mulf %71, %72 : vector<5x512xf32>
    %74 = arith.addf %68, %73 : vector<5x512xf32>
    %75 = vector.extract_strided_slice %2 {offsets = [0, 4], sizes = [5, 1], strides = [1, 1]} : vector<5x10xf32> to vector<5x1xf32>
    %76 = vector.extract_strided_slice %49 {offsets = [4, 0], sizes = [1, 512], strides = [1, 1]} : vector<10x512xf32> to vector<1x512xf32>
    %77 = vector.broadcast %75 : vector<5x1xf32> to vector<5x512xf32>
    %78 = vector.broadcast %76 : vector<1x512xf32> to vector<5x512xf32>
    %79 = arith.mulf %77, %78 : vector<5x512xf32>
    %80 = arith.addf %74, %79 : vector<5x512xf32>
    %81 = vector.extract_strided_slice %2 {offsets = [0, 5], sizes = [5, 1], strides = [1, 1]} : vector<5x10xf32> to vector<5x1xf32>
    %82 = vector.extract_strided_slice %49 {offsets = [5, 0], sizes = [1, 512], strides = [1, 1]} : vector<10x512xf32> to vector<1x512xf32>
    %83 = vector.broadcast %81 : vector<5x1xf32> to vector<5x512xf32>
    %84 = vector.broadcast %82 : vector<1x512xf32> to vector<5x512xf32>
    %85 = arith.mulf %83, %84 : vector<5x512xf32>
    %86 = arith.addf %80, %85 : vector<5x512xf32>
    %87 = vector.extract_strided_slice %2 {offsets = [0, 6], sizes = [5, 1], strides = [1, 1]} : vector<5x10xf32> to vector<5x1xf32>
    %88 = vector.extract_strided_slice %49 {offsets = [6, 0], sizes = [1, 512], strides = [1, 1]} : vector<10x512xf32> to vector<1x512xf32>
    %89 = vector.broadcast %87 : vector<5x1xf32> to vector<5x512xf32>
    %90 = vector.broadcast %88 : vector<1x512xf32> to vector<5x512xf32>
    %91 = arith.mulf %89, %90 : vector<5x512xf32>
    %92 = arith.addf %86, %91 : vector<5x512xf32>
    %93 = vector.extract_strided_slice %2 {offsets = [0, 7], sizes = [5, 1], strides = [1, 1]} : vector<5x10xf32> to vector<5x1xf32>
    %94 = vector.extract_strided_slice %49 {offsets = [7, 0], sizes = [1, 512], strides = [1, 1]} : vector<10x512xf32> to vector<1x512xf32>
    %95 = vector.broadcast %93 : vector<5x1xf32> to vector<5x512xf32>
    %96 = vector.broadcast %94 : vector<1x512xf32> to vector<5x512xf32>
    %97 = arith.mulf %95, %96 : vector<5x512xf32>
    %98 = arith.addf %92, %97 : vector<5x512xf32>
    %99 = vector.extract_strided_slice %2 {offsets = [0, 8], sizes = [5, 1], strides = [1, 1]} : vector<5x10xf32> to vector<5x1xf32>
    %100 = vector.extract_strided_slice %49 {offsets = [8, 0], sizes = [1, 512], strides = [1, 1]} : vector<10x512xf32> to vector<1x512xf32>
    %101 = vector.broadcast %99 : vector<5x1xf32> to vector<5x512xf32>
    %102 = vector.broadcast %100 : vector<1x512xf32> to vector<5x512xf32>
    %103 = arith.mulf %101, %102 : vector<5x512xf32>
    %104 = arith.addf %98, %103 : vector<5x512xf32>
    %105 = vector.extract_strided_slice %2 {offsets = [0, 9], sizes = [5, 1], strides = [1, 1]} : vector<5x10xf32> to vector<5x1xf32>
    %106 = vector.extract_strided_slice %49 {offsets = [9, 0], sizes = [1, 512], strides = [1, 1]} : vector<10x512xf32> to vector<1x512xf32>
    %107 = vector.broadcast %105 : vector<5x1xf32> to vector<5x512xf32>
    %108 = vector.broadcast %106 : vector<1x512xf32> to vector<5x512xf32>
    %109 = arith.mulf %107, %108 : vector<5x512xf32>
    %110 = arith.addf %104, %109 : vector<5x512xf32>
    %cst_14 = arith.constant 0.00999999977 : f32
    %111 = vector.broadcast %cst_14 : f32 to vector<5x512xf32>
    %112 = arith.mulf %111, %110 : vector<5x512xf32>
    %113 = arith.maximumf %110, %112 : vector<5x512xf32>
    %114 = vector.extract_strided_slice %4 {offsets = [0, 0], sizes = [3, 1], strides = [1, 1]} : vector<3x5xf32> to vector<3x1xf32>
    %115 = vector.extract_strided_slice %113 {offsets = [0, 0], sizes = [1, 512], strides = [1, 1]} : vector<5x512xf32> to vector<1x512xf32>
    %116 = vector.broadcast %114 : vector<3x1xf32> to vector<3x512xf32>
    %117 = vector.broadcast %115 : vector<1x512xf32> to vector<3x512xf32>
    %118 = arith.mulf %116, %117 : vector<3x512xf32>
    %119 = vector.broadcast %5 : vector<3x1xf32> to vector<3x512xf32>
    %120 = arith.addf %119, %118 : vector<3x512xf32>
    %121 = vector.extract_strided_slice %4 {offsets = [0, 1], sizes = [3, 1], strides = [1, 1]} : vector<3x5xf32> to vector<3x1xf32>
    %122 = vector.extract_strided_slice %113 {offsets = [1, 0], sizes = [1, 512], strides = [1, 1]} : vector<5x512xf32> to vector<1x512xf32>
    %123 = vector.broadcast %121 : vector<3x1xf32> to vector<3x512xf32>
    %124 = vector.broadcast %122 : vector<1x512xf32> to vector<3x512xf32>
    %125 = arith.mulf %123, %124 : vector<3x512xf32>
    %126 = arith.addf %120, %125 : vector<3x512xf32>
    %127 = vector.extract_strided_slice %4 {offsets = [0, 2], sizes = [3, 1], strides = [1, 1]} : vector<3x5xf32> to vector<3x1xf32>
    %128 = vector.extract_strided_slice %113 {offsets = [2, 0], sizes = [1, 512], strides = [1, 1]} : vector<5x512xf32> to vector<1x512xf32>
    %129 = vector.broadcast %127 : vector<3x1xf32> to vector<3x512xf32>
    %130 = vector.broadcast %128 : vector<1x512xf32> to vector<3x512xf32>
    %131 = arith.mulf %129, %130 : vector<3x512xf32>
    %132 = arith.addf %126, %131 : vector<3x512xf32>
    %133 = vector.extract_strided_slice %4 {offsets = [0, 3], sizes = [3, 1], strides = [1, 1]} : vector<3x5xf32> to vector<3x1xf32>
    %134 = vector.extract_strided_slice %113 {offsets = [3, 0], sizes = [1, 512], strides = [1, 1]} : vector<5x512xf32> to vector<1x512xf32>
    %135 = vector.broadcast %133 : vector<3x1xf32> to vector<3x512xf32>
    %136 = vector.broadcast %134 : vector<1x512xf32> to vector<3x512xf32>
    %137 = arith.mulf %135, %136 : vector<3x512xf32>
    %138 = arith.addf %132, %137 : vector<3x512xf32>
    %139 = vector.extract_strided_slice %4 {offsets = [0, 4], sizes = [3, 1], strides = [1, 1]} : vector<3x5xf32> to vector<3x1xf32>
    %140 = vector.extract_strided_slice %113 {offsets = [4, 0], sizes = [1, 512], strides = [1, 1]} : vector<5x512xf32> to vector<1x512xf32>
    %141 = vector.broadcast %139 : vector<3x1xf32> to vector<3x512xf32>
    %142 = vector.broadcast %140 : vector<1x512xf32> to vector<3x512xf32>
    %143 = arith.mulf %141, %142 : vector<3x512xf32>
    %144 = arith.addf %138, %143 : vector<3x512xf32>
    %cst_15 = arith.constant 0.000000e+00 : f32
    %145 = vector.broadcast %cst_15 : f32 to vector<3x512xf32>
    %146 = arith.subf %145, %144 : vector<3x512xf32>
    %147 = math.exp %146 : vector<3x512xf32>
    %cst_16 = arith.constant 1.000000e+00 : f32
    %148 = vector.broadcast %cst_16 : f32 to vector<3x512xf32>
    %149 = arith.addf %148, %147 : vector<3x512xf32>
    %cst_17 = arith.constant 1.000000e+00 : f32
    %150 = vector.broadcast %cst_17 : f32 to vector<3x512xf32>
    %151 = arith.divf %150, %149 : vector<3x512xf32>
    %152 = vector.extract_strided_slice %151 {offsets = [0, 0], sizes = [1, 512], strides = [1, 1]} : vector<3x512xf32> to vector<1x512xf32>
    %153 = vector.extract_strided_slice %151 {offsets = [1, 0], sizes = [1, 512], strides = [1, 1]} : vector<3x512xf32> to vector<1x512xf32>
    %154 = vector.extract_strided_slice %151 {offsets = [2, 0], sizes = [1, 512], strides = [1, 1]} : vector<3x512xf32> to vector<1x512xf32>
    %c0_i32_18 = arith.constant 0 : i32
    %155 = vector.broadcast %c0_i32_18 : i32 to vector<1x512xi32>
    %156 = arith.cmpf ogt, %153, %152 : vector<1x512xf32>
    %c1_i32 = arith.constant 1 : i32
    %157 = vector.broadcast %c1_i32 : i32 to vector<1x512xi32>
    %158 = arith.select %156, %157, %155 : vector<1x512xi1>, vector<1x512xi32>
    %159 = arith.select %156, %153, %152 : vector<1x512xi1>, vector<1x512xf32>
    %160 = arith.cmpf ogt, %154, %159 : vector<1x512xf32>
    %c2_i32 = arith.constant 2 : i32
    %161 = vector.broadcast %c2_i32 : i32 to vector<1x512xi32>
    %162 = arith.select %160, %161, %158 : vector<1x512xi1>, vector<1x512xi32>
    %163 = arith.index_cast %c0_i32 : i32 to index
    %c0_19 = arith.constant 0 : index
    %164 = vector.load %arg3[%163, %c0_19] : memref<1x512xi32, #tpu.memory_space<vmem>>, vector<1x512xi32>
    tpu.vector_store %arg3[%163, %c0_19], %162 {strides = array<i32>} : memref<1x512xi32, #tpu.memory_space<vmem>>, vector<1x512xi32>,
    %c1_i32_20 = arith.constant 1 : i32
    return
  }
  func.func @transform_0(%arg0: i32) -> (i32, i32, i32) {
    %c0_i32 = arith.constant 0 : i32
    %c0_i32_0 = arith.constant 0 : i32
    %c0_i32_1 = arith.constant 0 : i32
    return %c0_i32, %arg0, %c0_i32_0 : i32, i32, i32
  }
  func.func @transform_1(%arg0: i32) -> (i32, i32) {
    %c0_i32 = arith.constant 0 : i32
    %c0_i32_0 = arith.constant 0 : i32
    %c0_i32_1 = arith.constant 0 : i32
    return %c0_i32, %c0_i32_0 : i32, i32
  }
  func.func @transform_2(%arg0: i32) -> (i32, i32) {
    %c0_i32 = arith.constant 0 : i32
    %c0_i32_0 = arith.constant 0 : i32
    return %arg0, %c0_i32 : i32, i32
  }
}

</mosaic_0001>

<llo_original>
// kernel: numnet_forward.1
$region0: #{numnet_forward.1}
  #allocation0 [shape = 'u32[]', space=smem, size = 0x4, offset = 0x4, fixed_abs, tag = 'smem constant byte address 0x4 - core index']
  #allocation1 [shape = 'u32[144,128]{1,0:T(1,128)}', space=vmem, size = 0x12000, scoped, tag = 'internal scratch']
  %s0 = inlined_call_operand.vmem [shape: f32[5,1,512], index: 0, kind: input, shape index: {}]
  %s1 = inlined_call_operand.vmem [shape: f32[18,128], index: 1, kind: input, shape index: {}]
  %s2 = inlined_call_operand.vmem [shape: s32[1,512], index: 2, kind: output, shape index: {}]
  %s3 = sld [smem:[#allocation0]]
  $region18: #{numnet_forward.1} parent=0
    _
  %s5 = ssub.s32 1, %s3
  %s6 = scalar_select 0, %s5, %s3
  // Predicated region
  $region2: #{numnet_forward.1} parent=0 // pred_check
    _
  $region3: #{numnet_forward.1} parent=0 // pred_check_branch
    %8 = sbr.rel (0) target = $region5
  $region4: #{numnet_forward.1} parent=0 // pred_region
    _
  $region5: #{numnet_forward.1} parent=0 // pred_fallthru
    _
  // Predicated region
  $region6: #{numnet_forward.1} parent=0 // pred_check
    _
  $region7: #{numnet_forward.1} parent=0 // pred_check_branch
    %10 = sbr.rel (0) target = $region9
  $region8: #{numnet_forward.1} parent=0 // pred_region
    _
  $region9: #{numnet_forward.1} parent=0 // pred_fallthru
    _
  %v11 = vld [vmem:[%s1] sm:$0xff]
  %v12 = vld [vmem:[%s1 + $0x8] sm:$0x3]
  %v13 = vld [vmem:[%s1 + $0xa] sm:$0x1f]
  %v14 = vld [vmem:[%s1 + $0xf] sm:$0x7]
  %v15 = vld [vmem:[%s0] sm:$0xf]
  %17 = vset.pattern.permute.xlu0 0
  %18 = vperm.xlu0 %17, %v11
  %v19 = vpop.permute.xlu0 %18
  %22 = vset.pattern.permute.xlu0 0
  %23 = vperm.xlu0 %22, %v12
  %v24 = vpop.permute.xlu0 %23
  %v27 = vlaneseq
  %v28 = vshrl.u32 %v27, 7
  %v29 = vsub.s32 0, %v28
  %v30 = vrot.slane %v15, %v29
  %v31 = vlaneseq
  %v32 = vshrl.u32 %v31, 7
  %v33 = vsub.s32 1, %v32
  %v34 = vrot.slane %v15, %v33
  %v35 = vlaneseq
  %v36 = vshrl.u32 %v35, 7
  %v37 = vsub.s32 2, %v36
  %v38 = vrot.slane %v15, %v37
  %v39 = vlaneseq
  %v40 = vshrl.u32 %v39, 7
  %v41 = vsub.s32 3, %v40
  %v42 = vrot.slane %v15, %v41
  %v47 = vmul.f32 %v19, %v30
  %v48 = vmul.f32 %v19, %v34
  %v49 = vmul.f32 %v19, %v38
  %v50 = vmul.f32 %v19, %v42
  %v51 = vmul.f32 %v24, %v30
  %v52 = vmul.f32 %v24, %v34
  %v53 = vmul.f32 %v24, %v38
  %v54 = vmul.f32 %v24, %v42
  %55 = vset.pattern.permute.xlu0 5
  %56 = vperm.xlu0 %55, %v11
  %v57 = vpop.permute.xlu0 %56
  %59 = vset.pattern.permute.xlu0 5
  %60 = vperm.xlu0 %59, %v12
  %v61 = vpop.permute.xlu0 %60
  %v63 = vadd.f32 %v57, %v47
  %v64 = vadd.f32 %v57, %v48
  %v65 = vadd.f32 %v57, %v49
  %v66 = vadd.f32 %v57, %v50
  %v67 = vadd.f32 %v61, %v51
  %v68 = vadd.f32 %v61, %v52
  %v69 = vadd.f32 %v61, %v53
  %v70 = vadd.f32 %v61, %v54
  %s71 = scalar_lea.vmem %s0, 4
  %v72 = vld [vmem:[%s71] sm:$0xf]
  %73 = vset.pattern.permute.xlu0 1
  %74 = vperm.xlu0 %73, %v11
  %v75 = vpop.permute.xlu0 %74
  %77 = vset.pattern.permute.xlu0 1
  %78 = vperm.xlu0 %77, %v12
  %v79 = vpop.permute.xlu0 %78
  %v82 = vlaneseq
  %v83 = vshrl.u32 %v82, 7
  %v84 = vsub.s32 0, %v83
  %v85 = vrot.slane %v72, %v84
  %v86 = vlaneseq
  %v87 = vshrl.u32 %v86, 7
  %v88 = vsub.s32 1, %v87
  %v89 = vrot.slane %v72, %v88
  %v90 = vlaneseq
  %v91 = vshrl.u32 %v90, 7
  %v92 = vsub.s32 2, %v91
  %v93 = vrot.slane %v72, %v92
  %v94 = vlaneseq
  %v95 = vshrl.u32 %v94, 7
  %v96 = vsub.s32 3, %v95
  %v97 = vrot.slane %v72, %v96
  %v102 = vmul.f32 %v75, %v85
  %v103 = vmul.f32 %v75, %v89
  %v104 = vmul.f32 %v75, %v93
  %v105 = vmul.f32 %v75, %v97
  %v106 = vmul.f32 %v79, %v85
  %v107 = vmul.f32 %v79, %v89
  %v108 = vmul.f32 %v79, %v93
  %v109 = vmul.f32 %v79, %v97
  %v110 = vadd.f32 %v63, %v102
  %v111 = vadd.f32 %v64, %v103
  %v112 = vadd.f32 %v65, %v104
  %v113 = vadd.f32 %v66, %v105
  %v114 = vadd.f32 %v67, %v106
  %v115 = vadd.f32 %v68, %v107
  %v116 = vadd.f32 %v69, %v108
  %v117 = vadd.f32 %v70, %v109
  %s118 = scalar_lea.vmem %s0, 8
  %v119 = vld [vmem:[%s118] sm:$0xf]
  %120 = vset.pattern.permute.xlu0 2
  %121 = vperm.xlu0 %120, %v11
  %v122 = vpop.permute.xlu0 %121
  %124 = vset.pattern.permute.xlu0 2
  %125 = vperm.xlu0 %124, %v12
  %v126 = vpop.permute.xlu0 %125
  %v129 = vlaneseq
  %v130 = vshrl.u32 %v129, 7
  %v131 = vsub.s32 0, %v130
  %v132 = vrot.slane %v119, %v131
  %v133 = vlaneseq
  %v134 = vshrl.u32 %v133, 7
  %v135 = vsub.s32 1, %v134
  %v136 = vrot.slane %v119, %v135
  %v137 = vlaneseq
  %v138 = vshrl.u32 %v137, 7
  %v139 = vsub.s32 2, %v138
  %v140 = vrot.slane %v119, %v139
  %v141 = vlaneseq
  %v142 = vshrl.u32 %v141, 7
  %v143 = vsub.s32 3, %v142
  %v144 = vrot.slane %v119, %v143
  %v149 = vmul.f32 %v122, %v132
  %v150 = vmul.f32 %v122, %v136
  %v151 = vmul.f32 %v122, %v140
  %v152 = vmul.f32 %v122, %v144
  %v153 = vmul.f32 %v126, %v132
  %v154 = vmul.f32 %v126, %v136
  %v155 = vmul.f32 %v126, %v140
  %v156 = vmul.f32 %v126, %v144
  %v157 = vadd.f32 %v110, %v149
  %v158 = vadd.f32 %v111, %v150
  %v159 = vadd.f32 %v112, %v151
  %v160 = vadd.f32 %v113, %v152
  %v161 = vadd.f32 %v114, %v153
  %v162 = vadd.f32 %v115, %v154
  %v163 = vadd.f32 %v116, %v155
  %v164 = vadd.f32 %v117, %v156
  %s165 = scalar_lea.vmem %s0, 12
  %v166 = vld [vmem:[%s165] sm:$0xf]
  %167 = vset.pattern.permute.xlu0 3
  %168 = vperm.xlu0 %167, %v11
  %v169 = vpop.permute.xlu0 %168
  %171 = vset.pattern.permute.xlu0 3
  %172 = vperm.xlu0 %171, %v12
  %v173 = vpop.permute.xlu0 %172
  %v176 = vlaneseq
  %v177 = vshrl.u32 %v176, 7
  %v178 = vsub.s32 0, %v177
  %v179 = vrot.slane %v166, %v178
  %v180 = vlaneseq
  %v181 = vshrl.u32 %v180, 7
  %v182 = vsub.s32 1, %v181
  %v183 = vrot.slane %v166, %v182
  %v184 = vlaneseq
  %v185 = vshrl.u32 %v184, 7
  %v186 = vsub.s32 2, %v185
  %v187 = vrot.slane %v166, %v186
  %v188 = vlaneseq
  %v189 = vshrl.u32 %v188, 7
  %v190 = vsub.s32 3, %v189
  %v191 = vrot.slane %v166, %v190
  %v196 = vmul.f32 %v169, %v179
  %v197 = vmul.f32 %v169, %v183
  %v198 = vmul.f32 %v169, %v187
  %v199 = vmul.f32 %v169, %v191
  %v200 = vmul.f32 %v173, %v179
  %v201 = vmul.f32 %v173, %v183
  %v202 = vmul.f32 %v173, %v187
  %v203 = vmul.f32 %v173, %v191
  %v204 = vadd.f32 %v157, %v196
  %v205 = vadd.f32 %v158, %v197
  %v206 = vadd.f32 %v159, %v198
  %v207 = vadd.f32 %v160, %v199
  %v208 = vadd.f32 %v161, %v200
  %v209 = vadd.f32 %v162, %v201
  %v210 = vadd.f32 %v163, %v202
  %v211 = vadd.f32 %v164, %v203
  %s212 = scalar_lea.vmem %s0, 16
  %v213 = vld [vmem:[%s212] sm:$0xf]
  %214 = vset.pattern.permute.xlu0 4
  %215 = vperm.xlu0 %214, %v11
  %v216 = vpop.permute.xlu0 %215
  %218 = vset.pattern.permute.xlu0 4
  %219 = vperm.xlu0 %218, %v12
  %v220 = vpop.permute.xlu0 %219
  %v223 = vlaneseq
  %v224 = vshrl.u32 %v223, 7
  %v225 = vsub.s32 0, %v224
  %v226 = vrot.slane %v213, %v225
  %v227 = vlaneseq
  %v228 = vshrl.u32 %v227, 7
  %v229 = vsub.s32 1, %v228
  %v230 = vrot.slane %v213, %v229
  %v231 = vlaneseq
  %v232 = vshrl.u32 %v231, 7
  %v233 = vsub.s32 2, %v232
  %v234 = vrot.slane %v213, %v233
  %v235 = vlaneseq
  %v236 = vshrl.u32 %v235, 7
  %v237 = vsub.s32 3, %v236
  %v238 = vrot.slane %v213, %v237
  %v243 = vmul.f32 %v216, %v226
  %v244 = vmul.f32 %v216, %v230
  %v245 = vmul.f32 %v216, %v234
  %v246 = vmul.f32 %v216, %v238
  %v247 = vmul.f32 %v220, %v226
  %v248 = vmul.f32 %v220, %v230
  %v249 = vmul.f32 %v220, %v234
  %v250 = vmul.f32 %v220, %v238
  %v251 = vadd.f32 %v204, %v243
  %v252 = vadd.f32 %v205, %v244
  %v253 = vadd.f32 %v206, %v245
  %v254 = vadd.f32 %v207, %v246
  %v255 = vadd.f32 %v208, %v247
  %v256 = vadd.f32 %v209, %v248
  %v257 = vadd.f32 %v210, %v249
  %v258 = vadd.f32 %v211, %v250
  %v259 = vmul.f32 %v251, 0.01
  %v260 = vmul.f32 %v252, 0.01
  %v261 = vmul.f32 %v253, 0.01
  %v262 = vmul.f32 %v254, 0.01
  %v263 = vmul.f32 %v255, 0.01
  %v264 = vmul.f32 %v256, 0.01
  %v265 = vmul.f32 %v257, 0.01
  %v266 = vmul.f32 %v258, 0.01
  %v267 = vmax.f32 %v251, %v259
  %v268 = vmax.f32 %v252, %v260
  %v269 = vmax.f32 %v253, %v261
  %v270 = vmax.f32 %v254, %v262
  %v271 = vmax.f32 %v255, %v263
  %v272 = vmax.f32 %v256, %v264
  %v273 = vmax.f32 %v257, %v265
  %v274 = vmax.f32 %v258, %v266
  %276 = vset.pattern.permute.xlu0 0
  %277 = vperm.xlu0 %276, %v13
  %v278 = vpop.permute.xlu0 %277
  %v280 = vlaneseq
  %v281 = vshrl.u32 %v280, 7
  %v282 = vsub.s32 0, %v281
  %v283 = vrot.slane %v267, %v282
  %v284 = vlaneseq
  %v285 = vshrl.u32 %v284, 7
  %v286 = vsub.s32 0, %v285
  %v287 = vrot.slane %v268, %v286
  %v288 = vlaneseq
  %v289 = vshrl.u32 %v288, 7
  %v290 = vsub.s32 0, %v289
  %v291 = vrot.slane %v269, %v290
  %v292 = vlaneseq
  %v293 = vshrl.u32 %v292, 7
  %v294 = vsub.s32 0, %v293
  %v295 = vrot.slane %v270, %v294
  %v296 = vmul.f32 %v278, %v283
  %v297 = vmul.f32 %v278, %v287
  %v298 = vmul.f32 %v278, %v291
  %v299 = vmul.f32 %v278, %v295
  %300 = vset.pattern.permute.xlu0 10
  %301 = vperm.xlu0 %300, %v13
  %v302 = vpop.permute.xlu0 %301
  %v304 = vadd.f32 %v302, %v296
  %v305 = vadd.f32 %v302, %v297
  %v306 = vadd.f32 %v302, %v298
  %v307 = vadd.f32 %v302, %v299
  %308 = vset.pattern.permute.xlu0 1
  %309 = vperm.xlu0 %308, %v13
  %v310 = vpop.permute.xlu0 %309
  %v312 = vlaneseq
  %v313 = vshrl.u32 %v312, 7
  %v314 = vsub.s32 1, %v313
  %v315 = vrot.slane %v267, %v314
  %v316 = vlaneseq
  %v317 = vshrl.u32 %v316, 7
  %v318 = vsub.s32 1, %v317
  %v319 = vrot.slane %v268, %v318
  %v320 = vlaneseq
  %v321 = vshrl.u32 %v320, 7
  %v322 = vsub.s32 1, %v321
  %v323 = vrot.slane %v269, %v322
  %v324 = vlaneseq
  %v325 = vshrl.u32 %v324, 7
  %v326 = vsub.s32 1, %v325
  %v327 = vrot.slane %v270, %v326
  %v328 = vmul.f32 %v310, %v315
  %v329 = vmul.f32 %v310, %v319
  %v330 = vmul.f32 %v310, %v323
  %v331 = vmul.f32 %v310, %v327
  %v332 = vadd.f32 %v304, %v328
  %v333 = vadd.f32 %v305, %v329
  %v334 = vadd.f32 %v306, %v330
  %v335 = vadd.f32 %v307, %v331
  %336 = vset.pattern.permute.xlu0 2
  %337 = vperm.xlu0 %336, %v13
  %v338 = vpop.permute.xlu0 %337
  %v340 = vlaneseq
  %v341 = vshrl.u32 %v340, 7
  %v342 = vsub.s32 2, %v341
  %v343 = vrot.slane %v267, %v342
  %v344 = vlaneseq
  %v345 = vshrl.u32 %v344, 7
  %v346 = vsub.s32 2, %v345
  %v347 = vrot.slane %v268, %v346
  %v348 = vlaneseq
  %v349 = vshrl.u32 %v348, 7
  %v350 = vsub.s32 2, %v349
  %v351 = vrot.slane %v269, %v350
  %v352 = vlaneseq
  %v353 = vshrl.u32 %v352, 7
  %v354 = vsub.s32 2, %v353
  %v355 = vrot.slane %v270, %v354
  %v356 = vmul.f32 %v338, %v343
  %v357 = vmul.f32 %v338, %v347
  %v358 = vmul.f32 %v338, %v351
  %v359 = vmul.f32 %v338, %v355
  %v360 = vadd.f32 %v332, %v356
  %v361 = vadd.f32 %v333, %v357
  %v362 = vadd.f32 %v334, %v358
  %v363 = vadd.f32 %v335, %v359
  %364 = vset.pattern.permute.xlu0 3
  %365 = vperm.xlu0 %364, %v13
  %v366 = vpop.permute.xlu0 %365
  %v368 = vlaneseq
  %v369 = vshrl.u32 %v368, 7
  %v370 = vsub.s32 3, %v369
  %v371 = vrot.slane %v267, %v370
  %v372 = vlaneseq
  %v373 = vshrl.u32 %v372, 7
  %v374 = vsub.s32 3, %v373
  %v375 = vrot.slane %v268, %v374
  %v376 = vlaneseq
  %v377 = vshrl.u32 %v376, 7
  %v378 = vsub.s32 3, %v377
  %v379 = vrot.slane %v269, %v378
  %v380 = vlaneseq
  %v381 = vshrl.u32 %v380, 7
  %v382 = vsub.s32 3, %v381
  %v383 = vrot.slane %v270, %v382
  %v384 = vmul.f32 %v366, %v371
  %v385 = vmul.f32 %v366, %v375
  %v386 = vmul.f32 %v366, %v379
  %v387 = vmul.f32 %v366, %v383
  %v388 = vadd.f32 %v360, %v384
  %v389 = vadd.f32 %v361, %v385
  %v390 = vadd.f32 %v362, %v386
  %v391 = vadd.f32 %v363, %v387
  %392 = vset.pattern.permute.xlu0 4
  %393 = vperm.xlu0 %392, %v13
  %v394 = vpop.permute.xlu0 %393
  %v396 = vlaneseq
  %v397 = vshrl.u32 %v396, 7
  %v398 = vsub.s32 4, %v397
  %v399 = vrot.slane %v267, %v398
  %v400 = vlaneseq
  %v401 = vshrl.u32 %v400, 7
  %v402 = vsub.s32 4, %v401
  %v403 = vrot.slane %v268, %v402
  %v404 = vlaneseq
  %v405 = vshrl.u32 %v404, 7
  %v406 = vsub.s32 4, %v405
  %v407 = vrot.slane %v269, %v406
  %v408 = vlaneseq
  %v409 = vshrl.u32 %v408, 7
  %v410 = vsub.s32 4, %v409
  %v411 = vrot.slane %v270, %v410
  %v412 = vmul.f32 %v394, %v399
  %v413 = vmul.f32 %v394, %v403
  %v414 = vmul.f32 %v394, %v407
  %v415 = vmul.f32 %v394, %v411
  %v416 = vadd.f32 %v388, %v412
  %v417 = vadd.f32 %v389, %v413
  %v418 = vadd.f32 %v390, %v414
  %v419 = vadd.f32 %v391, %v415
  %420 = vset.pattern.permute.xlu0 5
  %421 = vperm.xlu0 %420, %v13
  %v422 = vpop.permute.xlu0 %421
  %v424 = vlaneseq
  %v425 = vshrl.u32 %v424, 7
  %v426 = vsub.s32 5, %v425
  %v427 = vrot.slane %v267, %v426
  %v428 = vlaneseq
  %v429 = vshrl.u32 %v428, 7
  %v430 = vsub.s32 5, %v429
  %v431 = vrot.slane %v268, %v430
  %v432 = vlaneseq
  %v433 = vshrl.u32 %v432, 7
  %v434 = vsub.s32 5, %v433
  %v435 = vrot.slane %v269, %v434
  %v436 = vlaneseq
  %v437 = vshrl.u32 %v436, 7
  %v438 = vsub.s32 5, %v437
  %v439 = vrot.slane %v270, %v438
  %v440 = vmul.f32 %v422, %v427
  %v441 = vmul.f32 %v422, %v431
  %v442 = vmul.f32 %v422, %v435
  %v443 = vmul.f32 %v422, %v439
  %v444 = vadd.f32 %v416, %v440
  %v445 = vadd.f32 %v417, %v441
  %v446 = vadd.f32 %v418, %v442
  %v447 = vadd.f32 %v419, %v443
  %448 = vset.pattern.permute.xlu0 6
  %449 = vperm.xlu0 %448, %v13
  %v450 = vpop.permute.xlu0 %449
  %v452 = vlaneseq
  %v453 = vshrl.u32 %v452, 7
  %v454 = vsub.s32 6, %v453
  %v455 = vrot.slane %v267, %v454
  %v456 = vlaneseq
  %v457 = vshrl.u32 %v456, 7
  %v458 = vsub.s32 6, %v457
  %v459 = vrot.slane %v268, %v458
  %v460 = vlaneseq
  %v461 = vshrl.u32 %v460, 7
  %v462 = vsub.s32 6, %v461
  %v463 = vrot.slane %v269, %v462
  %v464 = vlaneseq
  %v465 = vshrl.u32 %v464, 7
  %v466 = vsub.s32 6, %v465
  %v467 = vrot.slane %v270, %v466
  %v468 = vmul.f32 %v450, %v455
  %v469 = vmul.f32 %v450, %v459
  %v470 = vmul.f32 %v450, %v463
  %v471 = vmul.f32 %v450, %v467
  %v472 = vadd.f32 %v444, %v468
  %v473 = vadd.f32 %v445, %v469
  %v474 = vadd.f32 %v446, %v470
  %v475 = vadd.f32 %v447, %v471
  %476 = vset.pattern.permute.xlu0 7
  %477 = vperm.xlu0 %476, %v13
  %v478 = vpop.permute.xlu0 %477
  %v480 = vlaneseq
  %v481 = vshrl.u32 %v480, 7
  %v482 = vsub.s32 7, %v481
  %v483 = vrot.slane %v267, %v482
  %v484 = vlaneseq
  %v485 = vshrl.u32 %v484, 7
  %v486 = vsub.s32 7, %v485
  %v487 = vrot.slane %v268, %v486
  %v488 = vlaneseq
  %v489 = vshrl.u32 %v488, 7
  %v490 = vsub.s32 7, %v489
  %v491 = vrot.slane %v269, %v490
  %v492 = vlaneseq
  %v493 = vshrl.u32 %v492, 7
  %v494 = vsub.s32 7, %v493
  %v495 = vrot.slane %v270, %v494
  %v496 = vmul.f32 %v478, %v483
  %v497 = vmul.f32 %v478, %v487
  %v498 = vmul.f32 %v478, %v491
  %v499 = vmul.f32 %v478, %v495
  %v500 = vadd.f32 %v472, %v496
  %v501 = vadd.f32 %v473, %v497
  %v502 = vadd.f32 %v474, %v498
  %v503 = vadd.f32 %v475, %v499
  %504 = vset.pattern.permute.xlu0 8
  %505 = vperm.xlu0 %504, %v13
  %v506 = vpop.permute.xlu0 %505
  %v508 = vlaneseq
  %v509 = vshrl.u32 %v508, 7
  %v510 = vsub.s32 0, %v509
  %v511 = vrot.slane %v271, %v510
  %v512 = vlaneseq
  %v513 = vshrl.u32 %v512, 7
  %v514 = vsub.s32 0, %v513
  %v515 = vrot.slane %v272, %v514
  %v516 = vlaneseq
  %v517 = vshrl.u32 %v516, 7
  %v518 = vsub.s32 0, %v517
  %v519 = vrot.slane %v273, %v518
  %v520 = vlaneseq
  %v521 = vshrl.u32 %v520, 7
  %v522 = vsub.s32 0, %v521
  %v523 = vrot.slane %v274, %v522
  %v524 = vmul.f32 %v506, %v511
  %v525 = vmul.f32 %v506, %v515
  %v526 = vmul.f32 %v506, %v519
  %v527 = vmul.f32 %v506, %v523
  %v528 = vadd.f32 %v500, %v524
  %v529 = vadd.f32 %v501, %v525
  %v530 = vadd.f32 %v502, %v526
  %v531 = vadd.f32 %v503, %v527
  %532 = vset.pattern.permute.xlu0 9
  %533 = vperm.xlu0 %532, %v13
  %v534 = vpop.permute.xlu0 %533
  %v536 = vlaneseq
  %v537 = vshrl.u32 %v536, 7
  %v538 = vsub.s32 1, %v537
  %v539 = vrot.slane %v271, %v538
  %v540 = vlaneseq
  %v541 = vshrl.u32 %v540, 7
  %v542 = vsub.s32 1, %v541
  %v543 = vrot.slane %v272, %v542
  %v544 = vlaneseq
  %v545 = vshrl.u32 %v544, 7
  %v546 = vsub.s32 1, %v545
  %v547 = vrot.slane %v273, %v546
  %v548 = vlaneseq
  %v549 = vshrl.u32 %v548, 7
  %v550 = vsub.s32 1, %v549
  %v551 = vrot.slane %v274, %v550
  %v552 = vmul.f32 %v534, %v539
  %v553 = vmul.f32 %v534, %v543
  %v554 = vmul.f32 %v534, %v547
  %v555 = vmul.f32 %v534, %v551
  %v556 = vadd.f32 %v528, %v552
  %v557 = vadd.f32 %v529, %v553
  %v558 = vadd.f32 %v530, %v554
  %v559 = vadd.f32 %v531, %v555
  %v560 = vmul.f32 %v556, 0.01
  %v561 = vmul.f32 %v557, 0.01
  %v562 = vmul.f32 %v558, 0.01
  %v563 = vmul.f32 %v559, 0.01
  %v564 = vmax.f32 %v556, %v560
  %v565 = vmax.f32 %v557, %v561
  %v566 = vmax.f32 %v558, %v562
  %v567 = vmax.f32 %v559, %v563
  %569 = vset.pattern.permute.xlu0 0
  %570 = vperm.xlu0 %569, %v14
  %v571 = vpop.permute.xlu0 %570
  %v573 = vlaneseq
  %v574 = vshrl.u32 %v573, 7
  %v575 = vsub.s32 0, %v574
  %v576 = vrot.slane %v564, %v575
  %v577 = vlaneseq
  %v578 = vshrl.u32 %v577, 7
  %v579 = vsub.s32 0, %v578
  %v580 = vrot.slane %v565, %v579
  %v581 = vlaneseq
  %v582 = vshrl.u32 %v581, 7
  %v583 = vsub.s32 0, %v582
  %v584 = vrot.slane %v566, %v583
  %v585 = vlaneseq
  %v586 = vshrl.u32 %v585, 7
  %v587 = vsub.s32 0, %v586
  %v588 = vrot.slane %v567, %v587
  %v589 = vmul.f32 %v571, %v576
  %v590 = vmul.f32 %v571, %v580
  %v591 = vmul.f32 %v571, %v584
  %v592 = vmul.f32 %v571, %v588
  %593 = vset.pattern.permute.xlu0 5
  %594 = vperm.xlu0 %593, %v14
  %v595 = vpop.permute.xlu0 %594
  %v597 = vadd.f32 %v595, %v589
  %v598 = vadd.f32 %v595, %v590
  %v599 = vadd.f32 %v595, %v591
  %v600 = vadd.f32 %v595, %v592
  %601 = vset.pattern.permute.xlu0 1
  %602 = vperm.xlu0 %601, %v14
  %v603 = vpop.permute.xlu0 %602
  %v605 = vlaneseq
  %v606 = vshrl.u32 %v605, 7
  %v607 = vsub.s32 1, %v606
  %v608 = vrot.slane %v564, %v607
  %v609 = vlaneseq
  %v610 = vshrl.u32 %v609, 7
  %v611 = vsub.s32 1, %v610
  %v612 = vrot.slane %v565, %v611
  %v613 = vlaneseq
  %v614 = vshrl.u32 %v613, 7
  %v615 = vsub.s32 1, %v614
  %v616 = vrot.slane %v566, %v615
  %v617 = vlaneseq
  %v618 = vshrl.u32 %v617, 7
  %v619 = vsub.s32 1, %v618
  %v620 = vrot.slane %v567, %v619
  %v621 = vmul.f32 %v603, %v608
  %v622 = vmul.f32 %v603, %v612
  %v623 = vmul.f32 %v603, %v616
  %v624 = vmul.f32 %v603, %v620
  %v625 = vadd.f32 %v597, %v621
  %v626 = vadd.f32 %v598, %v622
  %v627 = vadd.f32 %v599, %v623
  %v628 = vadd.f32 %v600, %v624
  %629 = vset.pattern.permute.xlu0 2
  %630 = vperm.xlu0 %629, %v14
  %v631 = vpop.permute.xlu0 %630
  %v633 = vlaneseq
  %v634 = vshrl.u32 %v633, 7
  %v635 = vsub.s32 2, %v634
  %v636 = vrot.slane %v564, %v635
  %v637 = vlaneseq
  %v638 = vshrl.u32 %v637, 7
  %v639 = vsub.s32 2, %v638
  %v640 = vrot.slane %v565, %v639
  %v641 = vlaneseq
  %v642 = vshrl.u32 %v641, 7
  %v643 = vsub.s32 2, %v642
  %v644 = vrot.slane %v566, %v643
  %v645 = vlaneseq
  %v646 = vshrl.u32 %v645, 7
  %v647 = vsub.s32 2, %v646
  %v648 = vrot.slane %v567, %v647
  %v649 = vmul.f32 %v631, %v636
  %v650 = vmul.f32 %v631, %v640
  %v651 = vmul.f32 %v631, %v644
  %v652 = vmul.f32 %v631, %v648
  %v653 = vadd.f32 %v625, %v649
  %v654 = vadd.f32 %v626, %v650
  %v655 = vadd.f32 %v627, %v651
  %v656 = vadd.f32 %v628, %v652
  %657 = vset.pattern.permute.xlu0 3
  %658 = vperm.xlu0 %657, %v14
  %v659 = vpop.permute.xlu0 %658
  %v661 = vlaneseq
  %v662 = vshrl.u32 %v661, 7
  %v663 = vsub.s32 3, %v662
  %v664 = vrot.slane %v564, %v663
  %v665 = vlaneseq
  %v666 = vshrl.u32 %v665, 7
  %v667 = vsub.s32 3, %v666
  %v668 = vrot.slane %v565, %v667
  %v669 = vlaneseq
  %v670 = vshrl.u32 %v669, 7
  %v671 = vsub.s32 3, %v670
  %v672 = vrot.slane %v566, %v671
  %v673 = vlaneseq
  %v674 = vshrl.u32 %v673, 7
  %v675 = vsub.s32 3, %v674
  %v676 = vrot.slane %v567, %v675
  %v677 = vmul.f32 %v659, %v664
  %v678 = vmul.f32 %v659, %v668
  %v679 = vmul.f32 %v659, %v672
  %v680 = vmul.f32 %v659, %v676
  %v681 = vadd.f32 %v653, %v677
  %v682 = vadd.f32 %v654, %v678
  %v683 = vadd.f32 %v655, %v679
  %v684 = vadd.f32 %v656, %v680
  %685 = vset.pattern.permute.xlu0 4
  %686 = vperm.xlu0 %685, %v14
  %v687 = vpop.permute.xlu0 %686
  %v689 = vlaneseq
  %v690 = vshrl.u32 %v689, 7
  %v691 = vsub.s32 4, %v690
  %v692 = vrot.slane %v564, %v691
  %v693 = vlaneseq
  %v694 = vshrl.u32 %v693, 7
  %v695 = vsub.s32 4, %v694
  %v696 = vrot.slane %v565, %v695
  %v697 = vlaneseq
  %v698 = vshrl.u32 %v697, 7
  %v699 = vsub.s32 4, %v698
  %v700 = vrot.slane %v566, %v699
  %v701 = vlaneseq
  %v702 = vshrl.u32 %v701, 7
  %v703 = vsub.s32 4, %v702
  %v704 = vrot.slane %v567, %v703
  %v705 = vmul.f32 %v687, %v692
  %v706 = vmul.f32 %v687, %v696
  %v707 = vmul.f32 %v687, %v700
  %v708 = vmul.f32 %v687, %v704
  %v709 = vadd.f32 %v681, %v705
  %v710 = vadd.f32 %v682, %v706
  %v711 = vadd.f32 %v683, %v707
  %v712 = vadd.f32 %v684, %v708
  %v713 = vsub.f32 0.0, %v709
  %v714 = vsub.f32 0.0, %v710
  %v715 = vsub.f32 0.0, %v711
  %v716 = vsub.f32 0.0, %v712
  %v717 = vmul.f32 %v713, 1.442695
  %v718 = vpow.pop %v717
  %v719 = vmul.f32 %v714, 1.442695
  %v720 = vpow.pop %v719
  %v721 = vmul.f32 %v715, 1.442695
  %v722 = vpow.pop %v721
  %v723 = vmul.f32 %v716, 1.442695
  %v724 = vpow.pop %v723
  %v725 = vadd.f32 %v718, 1.0
  %v726 = vadd.f32 %v720, 1.0
  %v727 = vadd.f32 %v722, 1.0
  %v728 = vadd.f32 %v724, 1.0
  %v729 = vrcp.pop %v725
  %v730 = vmul.f32 1.0, %v729
  %v731 = vrcp.pop %v726
  %v732 = vmul.f32 1.0, %v731
  %v733 = vrcp.pop %v727
  %v734 = vmul.f32 1.0, %v733
  %v735 = vrcp.pop %v728
  %v736 = vmul.f32 1.0, %v735
  %v741 = vrot.slane %v730, 7
  %v742 = vrot.slane %v732, 7
  %v743 = vrot.slane %v734, 7
  %v744 = vrot.slane %v736, 7
  %vm749 = vcmp.gt.f32.partialorder %v730, %v741
  %vm750 = vcmp.gt.f32.partialorder %v732, %v742
  %vm751 = vcmp.gt.f32.partialorder %v734, %v743
  %vm752 = vcmp.gt.f32.partialorder %v736, %v744
  %v753 = vsel %vm749, 1, 0
  %v754 = vsel %vm750, 1, 0
  %v755 = vsel %vm751, 1, 0
  %v756 = vsel %vm752, 1, 0
  %v757 = vsel %vm749, %v730, %v741
  %v758 = vsel %vm750, %v732, %v742
  %v759 = vsel %vm751, %v734, %v743
  %v760 = vsel %vm752, %v736, %v744
  %v765 = vrot.slane %v757, 7
  %v766 = vrot.slane %v758, 7
  %v767 = vrot.slane %v759, 7
  %v768 = vrot.slane %v760, 7
  %vm773 = vcmp.gt.f32.partialorder %v730, %v765
  %vm774 = vcmp.gt.f32.partialorder %v732, %v766
  %vm775 = vcmp.gt.f32.partialorder %v734, %v767
  %vm776 = vcmp.gt.f32.partialorder %v736, %v768
  %v777 = vrot.slane %v753, 7
  %v778 = vrot.slane %v754, 7
  %v779 = vrot.slane %v755, 7
  %v780 = vrot.slane %v756, 7
  %v781 = vsel %vm773, 2, %v777
  %v782 = vsel %vm774, 2, %v778
  %v783 = vsel %vm775, 2, %v779
  %v784 = vsel %vm776, 2, %v780
  %v785 = vcombine.low %v781, %v782
  %v786 = vcombine.low %v783, %v784
  %v788 = vunpack.c.l.s4 1966171168
  %v789 = vunpack.c.0.s8 %v788
  %v790 = vlaneseq
  %v791 = vshrl.u32 %v790, 7
  %v792 = vsub.s32 %v789, %v791
  %v793 = vrot.slane %v785, %v792
  %v795 = vunpack.c.l.s4 1966171168
  %v796 = vunpack.c.0.s8 %v795
  %v797 = vlaneseq
  %v798 = vshrl.u32 %v797, 7
  %v799 = vsub.s32 %v796, %v798
  %v800 = vrot.slane %v786, %v799
  %v801 = vcombine.low %v793, %v800
  %v803 = vunpack.c.l.s4 1966171168
  %v804 = vunpack.c.0.s8 %v803
  %v805 = vlaneseq
  %v806 = vshrl.u32 %v805, 7
  %v807 = vsub.s32 %v804, %v806
  %v808 = vrot.slane %v801, %v807
  %v809 = vcombine.high %v808, %v808
  %v810 = vlaneseq
  %vm811 = vcmp.ge.s32.totalorder %v810, 0
  %vm812 = vcmp.lt.s32.totalorder %v810, 512
  %vm813 = vmand %vm811, %vm812
  %814 = vst.msk [vmem:[%s2] sm:$0xf] %vm813, %v809
  // Predicated region
  $region10: #{numnet_forward.1} parent=0 // pred_check
    _
  $region11: #{numnet_forward.1} parent=0 // pred_check_branch
    %816 = sbr.rel (0) target = $region13
  $region12: #{numnet_forward.1} parent=0 // pred_region
    _
  $region13: #{numnet_forward.1} parent=0 // pred_fallthru
    _
  // Predicated region
  $region14: #{numnet_forward.1} parent=0 // pred_check
    _
  $region15: #{numnet_forward.1} parent=0 // pred_check_branch
    %818 = sbr.rel (0) target = $region17
  $region16: #{numnet_forward.1} parent=0 // pred_region
    _
  $region17: #{numnet_forward.1} parent=0 // pred_fallthru
    _

</llo_original>
